<compile_context>
chip_gen: v7x
topology: tpu7x:2x2x1
jax: 0.10.0
libtpu: 0.0.40
codegen_flags: <defaults>
</compile_context>

<pallas_src>
import functools

import jax
import jax.numpy as jnp
from jax.experimental import pallas as pl
from jax.experimental.pallas import tpu as pltpu

_LANE = 128
_ACC_W = 512     # fixed narrow accumulator width (lanes)


def _round_up(x, m):
    return ((x + m - 1) // m) * m


def _vmem_budget():
    """(budget_bytes, physical_vmem_bytes) for sizing streamed input blocks.

    ~45% of physical VMEM: ~28 MiB on v7x (64 MiB/TC), ~56 MiB on v5e/v6e
    (128 MiB); generous headroom for compiler scratch, semaphores, weights.
    """
    cap = 64 << 20
    try:
        info = pltpu.get_tpu_info()
        cap = int(getattr(info, "vmem_capacity_bytes", cap) or cap)
    except Exception:
        pass
    return min(int(cap * 0.45), 56 << 20), cap


def _choose_spatial_tile(hw, c, in_bytes, *, vmem_budget, num_buffers=2,
                         target_block_bytes=8 << 20):
    """Byte-driven spatial tile: make each streamed input block several MiB so
    its DMA dwarfs the fixed per-grid-step overhead, capped by the VMEM budget
    (num_buffers input blocks + two narrow f32 accumulators + slack)."""
    hw_pad = _round_up(hw, _LANE)
    # Lanes for a ~target_block_bytes input block.
    want = _round_up(max(target_block_bytes // max(c * in_bytes, 1), _LANE), _LANE)
    # Lanes that fit in VMEM alongside the narrow accumulators.
    acc_bytes = 2 * c * min(_ACC_W, hw_pad) * 4
    avail = vmem_budget - acc_bytes - (1 << 20)
    fit = max((avail // (num_buffers * c * in_bytes)) // _LANE * _LANE, _LANE)
    t = min(hw_pad, want, fit)
    if t > _ACC_W:               # clean chunking into the narrow accumulators
        t = (t // _ACC_W) * _ACC_W
    return max(t, _LANE)


def _channel_attention_kernel(x_ref, w1_ref, w2_ref, o_ref, sum_acc, max_acc,
                              *, hw, t_hw, acc_w, n_spatial):
    k = pl.program_id(1)
    n_chunks = t_hw // acc_w              # static; t_hw % acc_w == 0
    ragged = (hw % t_hw) != 0             # static

    x = x_ref[0].astype(jnp.float32)      # (C, t_hw)

    def fold(xs, xm, assign_first):
        # Fold the (C, t_hw) tile into the narrow (C, acc_w) accumulators with
        # static acc_w-wide slices.  assign_first=True overwrites on the first
        # chunk of the first spatial step (no separate zero/-inf init pass).
        for i in range(n_chunks):
            s = xs[:, i * acc_w:(i + 1) * acc_w]
            m = xm[:, i * acc_w:(i + 1) * acc_w]
            if assign_first and i == 0:
                sum_acc[...] = s
                max_acc[...] = m
            else:
                sum_acc[...] = sum_acc[...] + s
                max_acc[...] = jnp.maximum(max_acc[...], m)

    def masked(xv):
        # Mask out-of-range lanes of the ragged last tile (0 for the sum,
        # -inf for the max).  Only executed on the last spatial step.
        lane = jax.lax.broadcasted_iota(jnp.int32, xv.shape, dimension=1)
        valid = (k * t_hw + lane) < hw
        return jnp.where(valid, xv, 0.0), jnp.where(valid, xv, -jnp.inf)

    if n_spatial == 1:
        # Statically both first and last spatial step.
        xs, xm = masked(x) if ragged else (x, x)
        fold(xs, xm, assign_first=True)
    else:
        is_first = k == 0
        is_last = k == n_spatial - 1

        @pl.when(is_first)
        def _first():                      # first tile is always full here
            fold(x, x, assign_first=True)

        if ragged:
            @pl.when(is_last)
            def _last():
                xs, xm = masked(x)
                fold(xs, xm, assign_first=False)

            @pl.when(jnp.logical_and(jnp.logical_not(is_first),
                                     jnp.logical_not(is_last)))
            def _mid():
                fold(x, x, assign_first=False)
        else:
            @pl.when(jnp.logical_not(is_first))
            def _rest():
                fold(x, x, assign_first=False)

    @pl.when(k == n_spatial - 1)
    def _epilogue():
        # One cross-lane (XLU) reduce per batch element, then the fused
        # sharedMLP for both pooled vectors: 2 tiny matmuls instead of 4.
        avg = jnp.sum(sum_acc[...], axis=-1, keepdims=True) * (1.0 / hw)   # (C,1)
        mx = jnp.max(max_acc[...], axis=-1, keepdims=True)                 # (C,1)
        p = jnp.concatenate([avg, mx], axis=-1)                            # (C,2)
        h = jnp.dot(w1_ref[...], p, preferred_element_type=jnp.float32)    # (Cr,2)
        h = jnp.maximum(h, 0.0)
        y = jnp.dot(w2_ref[...], h, preferred_element_type=jnp.float32)    # (C,2)
        o_ref[0] = jax.nn.sigmoid(y[:, 0:1] + y[:, 1:2])


def channel_attention(x, w1, w2, *, tile_hw=None, input_buffers=2):
    """x: (B, C, H, W); w1: (C//r, C, 1, 1); w2: (C, C//r, 1, 1).

    Returns the sigmoid attention map of shape (B, C, 1, 1) (PyTorch layout).
    x keeps its incoming dtype — feed bf16 to halve HBM traffic on this
    memory-bound kernel; accumulation happens in f32 inside the kernel.
    """
    B, C, H, W = x.shape
    Cr = w1.shape[0]
    HW = H * W

    x_flat = x.reshape(B, C, HW)                 # keep incoming dtype (bf16 ok)
    w1m = w1.reshape(Cr, C).astype(jnp.float32)  # (Cr, C)
    w2m = w2.reshape(C, Cr).astype(jnp.float32)  # (C, Cr)

    in_bytes = x_flat.dtype.itemsize
    budget, vmem_cap = _vmem_budget()
    if tile_hw is None:
        t_hw = _choose_spatial_tile(HW, C, in_bytes, vmem_budget=budget,
                                    num_buffers=input_buffers)
    else:
        if tile_hw % _LANE != 0:
            raise ValueError("tile_hw must be a multiple of 128")
        t_hw = tile_hw

    # Accumulator width: narrow, fixed (<= _ACC_W) and dividing t_hw so the
    # in-kernel chunked fold uses only static slices.
    if t_hw <= _ACC_W:
        acc_w = t_hw
    else:
        acc_w = _ACC_W
        while t_hw % acc_w != 0:
            acc_w -= _LANE

    n_spatial = (HW + t_hw - 1) // t_hw

    kernel = functools.partial(_channel_attention_kernel, hw=HW, t_hw=t_hw,
                               acc_w=acc_w, n_spatial=n_spatial)

    # VMEM actually used (input buffers + accumulators + weights + output)
    # plus headroom; capped well under physical VMEM on every generation.
    used = (input_buffers * C * t_hw * in_bytes     # streamed input buffers
            + 2 * C * acc_w * 4                     # sum / max accumulators
            + 2 * 2 * C * Cr * 4                    # (double-buffered) weights
            + 2 * C * 4)                            # output block
    vmem_limit = int(used * 1.25) + (4 << 20)
    vmem_limit = max(min(vmem_limit, vmem_cap * 3 // 4), 32 << 20)

    cost = pl.CostEstimate(
        flops=2 * B * C * HW + 8 * B * C * Cr,
        transcendentals=B * C,
        bytes_accessed=B * C * HW * in_bytes + 2 * C * Cr * 4 + B * C * 4,
    )

    if input_buffers == 2:
        x_spec = pl.BlockSpec((1, C, t_hw), lambda b, k: (b, 0, k))
    else:
        # Optional deeper pipelining once tiles are large (sweepable).
        x_spec = pl.BlockSpec((1, C, t_hw), lambda b, k: (b, 0, k),
                              pipeline_mode=pl.Buffered(input_buffers))

    out = pl.pallas_call(
        kernel,
        out_shape=jax.ShapeDtypeStruct((B, C, 1), jnp.float32),
        grid_spec=pltpu.PrefetchScalarGridSpec(
            num_scalar_prefetch=0,
            grid=(B, n_spatial),
            in_specs=[
                x_spec,
                pl.BlockSpec((Cr, C), lambda b, k: (0, 0)),
                pl.BlockSpec((C, Cr), lambda b, k: (0, 0)),
            ],
            # Output block index constant across the reduction axis -> resident.
            out_specs=pl.BlockSpec((1, C, 1), lambda b, k: (b, 0, 0)),
            scratch_shapes=[
                pltpu.VMEM((C, acc_w), jnp.float32),   # running sum
                pltpu.VMEM((C, acc_w), jnp.float32),   # running max
            ],
        ),
        compiler_params=pltpu.CompilerParams(
            dimension_semantics=("parallel", "arbitrary"),
            vmem_limit_bytes=vmem_limit,
        ),
        cost_estimate=cost,
    )(x_flat, w1m, w2m)

    return out.reshape(B, C, 1, 1)


def reference(x, w1, w2):
    """Pure-JAX reference mirroring the PyTorch forward."""
    B, C, H, W = x.shape
    Cr = w1.shape[0]
    w1m = w1.reshape(Cr, C)
    w2m = w2.reshape(C, Cr)
    xf = x.astype(jnp.float32)
    avg = jnp.mean(xf, axis=(2, 3))   # (B, C)
    mx = jnp.max(xf, axis=(2, 3))     # (B, C)

    def mlp(p):
        h = jnp.maximum(p @ w1m.T, 0.0)
        return h @ w2m.T

    out = jax.nn.sigmoid(mlp(avg) + mlp(mx))
    return out.reshape(B, C, 1, 1)


if __name__ == "__main__":
    key = jax.random.PRNGKey(0)
    B, C, ratio = 2, 64, 16
    Cr = C // ratio   # 4

    kx, k1, k2, kx2, kx3 = jax.random.split(key, 5)
    # Conv2d(C, C//r, 1, bias=False) weight -> (Cr, C, 1, 1)
    w1 = jax.random.normal(k1, (Cr, C, 1, 1), dtype=jnp.float32) * 0.1
    # Conv2d(C//r, C, 1, bias=False) weight -> (C, Cr, 1, 1)
    w2 = jax.random.normal(k2, (C, Cr, 1, 1), dtype=jnp.float32) * 0.1

    # Case 1: single-tile auto path (16x16).
    x = jax.random.normal(kx, (B, C, 16, 16), dtype=jnp.float32)
    out = jax.block_until_ready(channel_attention(x, w1, w2))
    ref = reference(x, w1, w2)
    assert out.shape == (B, C, 1, 1)
    assert jnp.allclose(out, ref, atol=1e-5, rtol=1e-5), "case 1 mismatch"

    # Case 2: multi-tile streaming with a ragged (masked) last spatial tile.
    x2 = jax.random.normal(kx2, (B, C, 12, 12), dtype=jnp.float32)
    out2 = jax.block_until_ready(channel_attention(x2, w1, w2, tile_hw=128))
    ref2 = reference(x2, w1, w2)
    assert jnp.allclose(out2, ref2, atol=1e-5, rtol=1e-5), "case 2 mismatch"

    # Case 3: larger spatial extent, auto byte-driven tile (chunked fold into
    # the narrow accumulators + ragged last tile).
    x3 = jax.random.normal(kx3, (B, C, 48, 48), dtype=jnp.float32)
    out3 = jax.block_until_ready(channel_attention(x3, w1, w2))
    ref3 = reference(x3, w1, w2)
    assert jnp.allclose(out3, ref3, atol=1e-5, rtol=1e-5), "case 3 mismatch"

    # Case 4: forced tile exercising first / middle / masked-last steps with
    # multi-chunk folds (t_hw=1024, acc_w=512).
    out4 = jax.block_until_ready(channel_attention(x3, w1, w2, tile_hw=1024))
    assert jnp.allclose(out4, ref3, atol=1e-5, rtol=1e-5), "case 4 mismatch"

    # Case 5: bf16 input stream (half HBM traffic), f32 accumulation inside.
    x5 = x.astype(jnp.bfloat16)
    out5 = jax.block_until_ready(channel_attention(x5, w1, w2))
    ref5 = reference(x5, w1, w2)
    assert jnp.allclose(out5, ref5, atol=1e-4, rtol=1e-4), "case 5 mismatch"

    print("KERNEL_OK")
</pallas_src>

<mosaic_0001>
module attributes {stable_mosaic.version = 11 : i64} {
  func.func @_channel_attention_kernel(%arg0: i32, %arg1: i32, %arg2: memref<1x64x256xf32, #tpu.memory_space<vmem>>, %arg3: memref<4x64xf32, #tpu.memory_space<vmem>>, %arg4: memref<64x4xf32, #tpu.memory_space<vmem>>, %arg5: memref<1x64x1xf32, #tpu.memory_space<vmem>>, %arg6: memref<64x256xf32, #tpu.memory_space<vmem>>, %arg7: memref<64x256xf32, #tpu.memory_space<vmem>>) attributes {dimension_semantics = [#tpu.dimension_semantics<parallel>, #tpu.dimension_semantics<arbitrary>], iteration_bounds = array<i64: 2, 1>, scalar_prefetch = 0 : i64, scratch_operands = 2 : i64, tpu.core_type = #tpu.core_type<tc>, window_params = [{transform_indices = @transform_0, window_bounds = array<i64: 1, 64, 256>}, {pipeline_mode = #tpu.pipeline_mode<synchronous>, transform_indices = @transform_1, window_bounds = array<i64: 4, 64>}, {pipeline_mode = #tpu.pipeline_mode<synchronous>, transform_indices = @transform_2, window_bounds = array<i64: 64, 4>}, {transform_indices = @transform_3, window_bounds = array<i64: 1, 64, 1>}]} {
    %c0 = arith.constant 0 : index
    %c0_0 = arith.constant 0 : index
    %c0_1 = arith.constant 0 : index
    %0 = vector.load %arg2[%c0, %c0_0, %c0_1] : memref<1x64x256xf32, #tpu.memory_space<vmem>>, vector<1x64x256xf32>
    %1 = vector.shape_cast %0 : vector<1x64x256xf32> to vector<64x256xf32>
    %c0_2 = arith.constant 0 : index
    %c0_3 = arith.constant 0 : index
    %2 = vector.load %arg6[%c0_2, %c0_3] : memref<64x256xf32, #tpu.memory_space<vmem>>, vector<64x256xf32>
    tpu.vector_store %arg6[%c0_2, %c0_3], %1 {strides = array<i32>} : memref<64x256xf32, #tpu.memory_space<vmem>>, vector<64x256xf32>,
    %c0_4 = arith.constant 0 : index
    %c0_5 = arith.constant 0 : index
    %3 = vector.load %arg7[%c0_4, %c0_5] : memref<64x256xf32, #tpu.memory_space<vmem>>, vector<64x256xf32>
    tpu.vector_store %arg7[%c0_4, %c0_5], %1 {strides = array<i32>} : memref<64x256xf32, #tpu.memory_space<vmem>>, vector<64x256xf32>,
    %c0_i32 = arith.constant 0 : i32
    %4 = arith.cmpi eq, %arg1, %c0_i32 : i32
    %5 = arith.extui %4 : i1 to i32
    %c0_i32_6 = arith.constant 0 : i32
    %6 = arith.cmpi ne, %5, %c0_i32_6 : i32
    scf.if %6 {
      %c0_7 = arith.constant 0 : index
      %c0_8 = arith.constant 0 : index
      %7 = vector.load %arg6[%c0_7, %c0_8] : memref<64x256xf32, #tpu.memory_space<vmem>>, vector<64x256xf32>
      %cst = arith.constant dense<0.000000e+00> : vector<64xf32>
      %8 = vector.multi_reduction <add>, %7, %cst [1] : vector<64x256xf32> to vector<64xf32>
      %9 = vector.shape_cast %8 : vector<64xf32> to vector<64x1xf32>
      %cst_9 = arith.constant 3.906250e-03 : f32
      %10 = vector.broadcast %cst_9 : f32 to vector<64x1xf32>
      %11 = arith.mulf %9, %10 : vector<64x1xf32>
      %c0_10 = arith.constant 0 : index
      %c0_11 = arith.constant 0 : index
      %12 = vector.load %arg7[%c0_10, %c0_11] : memref<64x256xf32, #tpu.memory_space<vmem>>, vector<64x256xf32>
      %cst_12 = arith.constant dense<0xFF800000> : vector<64xf32>
      %13 = vector.multi_reduction <maximumf>, %12, %cst_12 [1] : vector<64x256xf32> to vector<64xf32>
      %14 = vector.shape_cast %13 : vector<64xf32> to vector<64x1xf32>
      %15 = tpu.concatenate %11, %14 in 1 : vector<64x1xf32>, vector<64x1xf32> -> vector<64x2xf32>
      %c0_13 = arith.constant 0 : index
      %c0_14 = arith.constant 0 : index
      %16 = vector.load %arg3[%c0_13, %c0_14] : memref<4x64xf32, #tpu.memory_space<vmem>>, vector<4x64xf32>
      %cst_15 = arith.constant dense<0.000000e+00> : vector<4x2xf32>
      %17 = tpu.matmul %16, %15, %cst_15 {dimension_numbers = #tpu.dot_dimension_numbers<[1], [0], [0], [1], [0, 0, 1, 1], [], []>} : vector<4x64xf32>, vector<64x2xf32>, vector<4x2xf32> -> vector<4x2xf32>
      %cst_16 = arith.constant 0.000000e+00 : f32
      %18 = vector.broadcast %cst_16 : f32 to vector<4x2xf32>
      %19 = arith.maximumf %17, %18 : vector<4x2xf32>
      %c0_17 = arith.constant 0 : index
      %c0_18 = arith.constant 0 : index
      %20 = vector.load %arg4[%c0_17, %c0_18] : memref<64x4xf32, #tpu.memory_space<vmem>>, vector<64x4xf32>
      %cst_19 = arith.constant dense<0.000000e+00> : vector<64x2xf32>
      %21 = tpu.matmul %20, %19, %cst_19 {dimension_numbers = #tpu.dot_dimension_numbers<[1], [0], [0], [1], [0, 0, 1, 1], [], []>} : vector<64x4xf32>, vector<4x2xf32>, vector<64x2xf32> -> vector<64x2xf32>
      %22 = vector.extract_strided_slice %21 {offsets = [0, 0], sizes = [64, 1], strides = [1, 1]} : vector<64x2xf32> to vector<64x1xf32>
      %23 = vector.extract_strided_slice %21 {offsets = [0, 1], sizes = [64, 1], strides = [1, 1]} : vector<64x2xf32> to vector<64x1xf32>
      %24 = arith.addf %22, %23 : vector<64x1xf32>
      %25 = arith.negf %24 : vector<64x1xf32>
      %26 = math.exp %25 : vector<64x1xf32>
      %cst_20 = arith.constant 1.000000e+00 : f32
      %27 = vector.broadcast %cst_20 : f32 to vector<64x1xf32>
      %28 = arith.addf %27, %26 : vector<64x1xf32>
      %29 = arith.divf %27, %28 : vector<64x1xf32>
      %c0_21 = arith.constant 0 : index
      %c0_22 = arith.constant 0 : index
      %c0_23 = arith.constant 0 : index
      %30 = vector.load %arg5[%c0_21, %c0_22, %c0_23] : memref<1x64x1xf32, #tpu.memory_space<vmem>>, vector<1x64x1xf32>
      %31 = vector.shape_cast %30 : vector<1x64x1xf32> to vector<64x1xf32>
      %32 = vector.shape_cast %29 : vector<64x1xf32> to vector<1x64x1xf32>
      tpu.vector_store %arg5[%c0_21, %c0_22, %c0_23], %32 {strides = array<i32>} : memref<1x64x1xf32, #tpu.memory_space<vmem>>, vector<1x64x1xf32>,
    } else {
    }
    return
  }
  func.func @transform_0(%arg0: i32, %arg1: i32) -> (i32, i32, i32) {
    %c0_i32 = arith.constant 0 : i32
    %c0_i32_0 = arith.constant 0 : i32
    return %arg0, %c0_i32, %arg1 : i32, i32, i32
  }
  func.func @transform_1(%arg0: i32, %arg1: i32) -> (i32, i32) {
    %c0_i32 = arith.constant 0 : i32
    %c0_i32_0 = arith.constant 0 : i32
    %c0_i32_1 = arith.constant 0 : i32
    return %c0_i32, %c0_i32_0 : i32, i32
  }
  func.func @transform_2(%arg0: i32, %arg1: i32) -> (i32, i32) {
    %c0_i32 = arith.constant 0 : i32
    %c0_i32_0 = arith.constant 0 : i32
    %c0_i32_1 = arith.constant 0 : i32
    return %c0_i32, %c0_i32_0 : i32, i32
  }
  func.func @transform_3(%arg0: i32, %arg1: i32) -> (i32, i32, i32) {
    %c0_i32 = arith.constant 0 : i32
    %c0_i32_0 = arith.constant 0 : i32
    %c0_i32_1 = arith.constant 0 : i32
    return %arg0, %c0_i32, %c0_i32_0 : i32, i32, i32
  }
}

</mosaic_0001>

<llo_original>
// kernel: tpu_custom_call.1
$region0: #{tpu_custom_call.1}
  #allocation0 [shape = 'u32[]', space=smem, size = 0x4, offset = 0x4, fixed_abs, tag = 'smem constant byte address 0x4 - core index']
  #allocation1 [shape = 'u32[144,128]{1,0:T(1,128)}', space=vmem, size = 0x12000, scoped, tag = 'internal scratch']
  #allocation2 [shape = 'f32[64,256]{1,0:T(8,128)}', space=vmem, size = 0x10000, scoped, tag = 'scratch operand']
  #allocation3 [shape = 'f32[64,256]{1,0:T(8,128)}', space=vmem, size = 0x10000, scoped, tag = 'scratch operand']
  %s0 = inlined_call_operand.hbm [shape: f32[2,64,256], index: 0, kind: input, shape index: {}]
  %s1 = inlined_call_operand.vmem [shape: f32[4,64], index: 1, kind: input, shape index: {}]
  %s2 = inlined_call_operand.vmem [shape: f32[64,4], index: 2, kind: input, shape index: {}]
  %s3 = inlined_call_operand.vmem [shape: f32[2,64,1], index: 3, kind: output, shape index: {}]
  %s4 = sld [smem:[#allocation0]]
  $region53: #{tpu_custom_call.1} parent=0
    _
  %s6 = ssub.s32 1, %s4
  %s7 = scalar_select 0, %s6, %s4
  $region1: #{tpu_custom_call.1} parent=0
    #allocation4 [shape = 'u8[131072]{0}', space=vmem, size = 0x20000, scoped, tag = 'input window, operand 0']
    #allocation5 [shape = 's32[2]{0}', space=sflag, size = 0x8, scoped, tag = 'scoped memory for tpu_custom_call.1']
    %8 = vsyncpa [#allocation5], 0
    %s9 = scalar_lea.sflag [#allocation5], 1
    %10 = vsyncpa %s9, 0
    loop: start=0, step=1, limit=4
    $region2: #{tpu_custom_call.1} parent=1 // loop_pre_header
      _
    $region3: #{tpu_custom_call.1} parent=1 // loop_header
      %s12 = sphi 0, %s16
      %p13 = scmp.ge.s32.totalorder %s12, 4
      %s19 = sphi 0, %s31
      %s20 = sphi 0, %s27
      %s21 = sphi 0, %s19
      %s22 = sphi 0, %s20
      %s23 = sphi 0, %s21
      %s24 = sphi 0, %s22
      %s36 = sphi 0, %s38
      %s39 = sphi 0, %s36
      %s40 = sphi 0, %s39
      %s56 = sphi 0, %s40
      %s60 = sphi 0, %s60
      %s62 = sphi 0, %s60
      %s63 = sphi 0, %s62
      %s77 = sphi 0, %s63
      %s81 = sphi 0, %s81
      %s83 = sphi 0, %s81
      %s84 = sphi 0, %s83
      %s98 = sphi 0, %s84
      %s104 = sphi 0, %s106
      %s107 = sphi 0, %s104
      %s108 = sphi 0, %s107
      %s124 = sphi 0, %s108
    $region4: #{tpu_custom_call.1} parent=1 // loop_header_branch
      %15 = sbr.rel (%p13) target = $region8
    $region5: #{tpu_custom_call.1} parent=1 // loop_body
      %s17 = ssub.s32 %s12, 1
      %s18 = ssub.s32 %s12, 2
      %s25 = sadd.s32 1, %s20
      %p26 = scmp.ge.s32.totalorder %s25, 1
      %s27 = scalar_select %p26, 0, %s25
      %s28 = sadd.s32 1, %s19
      %s29 = scalar_select %p26, %s28, %s19
      %p30 = scmp.ge.s32.totalorder %s29, 2
      %s31 = scalar_select %p30, 0, %s29
      %s32 = ssub.s32 %s19, %s31
      %s33 = ssub.s32 %s20, %s27
      %s34 = sor.u32 %s32, %s33
      %p35 = scmp.eq.s32.totalorder %s34, 0
      %s37 = sadd.s32 %s36, 1
      %s38 = scalar_select %p35, %s36, %s37
      %p41 = pneg %p35
      %p42 = scmp.eq.s32.totalorder %s12, 1
      %p43 = por %p41, %p42
      %p44 = scmp.ne.s32.totalorder %s36, %s39
      %p45 = scmp.eq.s32.totalorder %s12, 0
      %p46 = por %p44, %p45
      %p47 = scmp.ne.s32.totalorder %s36, %s39
      %p48 = scmp.eq.s32.totalorder %s17, 1
      %p49 = por %p47, %p48
      %p50 = scmp.ne.s32.totalorder %s39, %s40
      %p51 = scmp.eq.s32.totalorder %s17, 0
      %p52 = por %p50, %p51
      %p53 = scmp.ne.s32.totalorder %s39, %s40
      %p54 = scmp.eq.s32.totalorder %s18, 1
      %p55 = por %p53, %p54
      %p57 = scmp.ne.s32.totalorder %s40, %s56
      %p58 = scmp.eq.s32.totalorder %s18, 0
      %p59 = por %p57, %p58
      %s61 = sadd.s32 %s60, 1
      %p64 = scmp.eq.s32.totalorder %s12, 1
      %p65 = scmp.ne.s32.totalorder %s60, %s62
      %p66 = scmp.eq.s32.totalorder %s12, 0
      %p67 = por %p65, %p66
      %p68 = scmp.ne.s32.totalorder %s60, %s62
      %p69 = scmp.eq.s32.totalorder %s17, 1
      %p70 = por %p68, %p69
      %p71 = scmp.ne.s32.totalorder %s62, %s63
      %p72 = scmp.eq.s32.totalorder %s17, 0
      %p73 = por %p71, %p72
      %p74 = scmp.ne.s32.totalorder %s62, %s63
      %p75 = scmp.eq.s32.totalorder %s18, 1
      %p76 = por %p74, %p75
      %p78 = scmp.ne.s32.totalorder %s63, %s77
      %p79 = scmp.eq.s32.totalorder %s18, 0
      %p80 = por %p78, %p79
      %s82 = sadd.s32 %s81, 1
      %p85 = scmp.eq.s32.totalorder %s12, 1
      %p86 = scmp.ne.s32.totalorder %s81, %s83
      %p87 = scmp.eq.s32.totalorder %s12, 0
      %p88 = por %p86, %p87
      %p89 = scmp.ne.s32.totalorder %s81, %s83
      %p90 = scmp.eq.s32.totalorder %s17, 1
      %p91 = por %p89, %p90
      %p92 = scmp.ne.s32.totalorder %s83, %s84
      %p93 = scmp.eq.s32.totalorder %s17, 0
      %p94 = por %p92, %p93
      %p95 = scmp.ne.s32.totalorder %s83, %s84
      %p96 = scmp.eq.s32.totalorder %s18, 1
      %p97 = por %p95, %p96
      %p99 = scmp.ne.s32.totalorder %s84, %s98
      %p100 = scmp.eq.s32.totalorder %s18, 0
      %p101 = por %p99, %p100
      %s102 = ssub.s32 %s19, %s31
      %p103 = scmp.eq.s32.totalorder %s102, 0
      %s105 = sadd.s32 %s104, 1
      %s106 = scalar_select %p103, %s104, %s105
      %p109 = pneg %p103
      %p110 = scmp.eq.s32.totalorder %s12, 1
      %p111 = por %p109, %p110
      %p112 = scmp.ne.s32.totalorder %s104, %s107
      %p113 = scmp.eq.s32.totalorder %s12, 0
      %p114 = por %p112, %p113
      %p115 = scmp.ne.s32.totalorder %s104, %s107
      %p116 = scmp.eq.s32.totalorder %s17, 1
      %p117 = por %p115, %p116
      %p118 = scmp.ne.s32.totalorder %s107, %s108
      %p119 = scmp.eq.s32.totalorder %s17, 0
      %p120 = por %p118, %p119
      %p121 = scmp.ne.s32.totalorder %s107, %s108
      %p122 = scmp.eq.s32.totalorder %s18, 1
      %p123 = por %p121, %p122
      %p125 = scmp.ne.s32.totalorder %s108, %s124
      %p126 = scmp.eq.s32.totalorder %s18, 0
      %p127 = por %p125, %p126
      %p128 = scmp.le.s32.totalorder 1, %s12
      %p129 = scmp.lt.s32.totalorder %s12, 3
      %p130 = pnand %p128, %p129
      %p131 = pneg %p130
      // Predicated region
      $region9: #{tpu_custom_call.1} parent=5 // pred_check
        _
      $region10: #{tpu_custom_call.1} parent=5 // pred_check_branch
        %133 = sbr.rel (%p130) target = $region12
      $region11: #{tpu_custom_call.1} parent=5 // pred_region
        %s134 = ssub.s32 %s12, 1
        // Predicated region
        $region13: #{tpu_custom_call.1} parent=11 // pred_check
          %p135 = pneg %p73
        $region14: #{tpu_custom_call.1} parent=11 // pred_check_branch
          %137 = sbr.rel (%p135) target = $region16
        $region15: #{tpu_custom_call.1} parent=11 // pred_region
          _
        $region16: #{tpu_custom_call.1} parent=11 // pred_fallthru
          _
        // Predicated region
        $region17: #{tpu_custom_call.1} parent=11 // pred_check
          %p138 = pneg %p94
        $region18: #{tpu_custom_call.1} parent=11 // pred_check_branch
          %140 = sbr.rel (%p138) target = $region20
        $region19: #{tpu_custom_call.1} parent=11 // pred_region
          _
        $region20: #{tpu_custom_call.1} parent=11 // pred_fallthru
          _
      $region12: #{tpu_custom_call.1} parent=5 // pred_fallthru
        _
      %p141 = scmp.lt.s32.totalorder %s12, 2
      // Predicated region
      $region21: #{tpu_custom_call.1} parent=5 // pred_check
        %p142 = pneg %p141
      $region22: #{tpu_custom_call.1} parent=5 // pred_check_branch
        %144 = sbr.rel (%p142) target = $region24
      $region23: #{tpu_custom_call.1} parent=5 // pred_region
        // Predicated region
        $region25: #{tpu_custom_call.1} parent=23 // pred_check
          %p145 = pneg %p46
        $region26: #{tpu_custom_call.1} parent=23 // pred_check_branch
          %147 = sbr.rel (%p145) target = $region28
        $region27: #{tpu_custom_call.1} parent=23 // pred_region
          %s148 = sand.u32 %s36, 1
          %s149 = scalar_lea.sflag [#allocation5], %s148
          %s150 = sand.u32 %s36, 1
          %s151 = smul.addr %s150, 128
          %s152 = scalar_lea.vmem [#allocation4], %s151
          %s153 = smul.u32 2, %s20
          %s155 = ssub.s32 2048, 2048
          %156 = vsyncadd %s149, %s155
          %s157 = smul.addr %s19, 16
          %s158 = sadd.s32 %s153, %s157
          %s159 = smul.addr %s158, 128
          %s160 = scalar_lea.hbm %s0, %s159
          %s161 = sshll.u32 %s152, 4
          %s162 = int_to_ptr.vmem [resolvable:$true] %s161
          %167 = dma.hbm_to_vmem [thread:$0]  %s160, 2048, %s162, %s149, 256, 256, 16
        $region28: #{tpu_custom_call.1} parent=23 // pred_fallthru
          _
      $region24: #{tpu_custom_call.1} parent=5 // pred_fallthru
        _
      %p168 = scmp.le.s32.totalorder 1, %s12
      %p169 = scmp.lt.s32.totalorder %s12, 3
      %p170 = pnand %p168, %p169
      %p171 = pneg %p170
      // Predicated region
      $region29: #{tpu_custom_call.1} parent=5 // pred_check
        _
      $region30: #{tpu_custom_call.1} parent=5 // pred_check_branch
        %173 = sbr.rel (%p170) target = $region32
      $region31: #{tpu_custom_call.1} parent=5 // pred_region
        %s174 = ssub.s32 %s12, 1
        %s175 = sand.u32 %s39, 1
        %s176 = scalar_lea.sflag [#allocation5], %s175
        %s177 = sand.u32 %s39, 1
        %s178 = smul.addr %s177, 128
        %s179 = scalar_lea.vmem [#allocation4], %s178
        // Predicated region
        $region33: #{tpu_custom_call.1} parent=31 // pred_check
          %p180 = pneg %p52
        $region34: #{tpu_custom_call.1} parent=31 // pred_check_branch
          %182 = sbr.rel (%p180) target = $region36
        $region35: #{tpu_custom_call.1} parent=31 // pred_region
          %183 = dma.done %s176, 2048
        $region36: #{tpu_custom_call.1} parent=31 // pred_fallthru
          _
        %s184 = sand.u32 %s39, 1
        %s185 = scalar_lea.sflag [#allocation5], %s184
        %s186 = sand.u32 %s39, 1
        %s187 = smul.addr %s186, 128
        %s188 = scalar_lea.vmem [#allocation4], %s187
        %p189 = pneg %p52
        %p190 = pneg %p49
        %p191 = pneg %p73
        %p192 = pneg %p70
        %p193 = pneg %p94
        %p194 = pneg %p91
        %p195 = pneg %p120
        %p196 = pneg %p117
        %p197 = scmp.lt.s32.totalorder %s21, 1
        %s198 = scalar_select %p197, %s21, 1
        %s199 = smul.addr %s198, 8
        %s200 = smul.addr %s199, 8
        %s201 = scalar_lea.vmem %s3, %s200
        %s202 = smul.u32 2, %s22
        %p203 = scmp.lt.s32.totalorder %s21, 1
        %s204 = scalar_select %p203, %s21, 1
        %s205 = smul.addr %s204, 8
        %s206 = smul.addr %s205, 8
        %s207 = scalar_lea.vmem %s3, %s206
        %v208 = vld [vmem:[%s179] sm:$0xff]
        %v209 = vld [vmem:[%s179 + $0x8] sm:$0xff]
        %v210 = vld [vmem:[%s179 + $0x10] sm:$0xff]
        %v211 = vld [vmem:[%s179 + $0x18] sm:$0xff]
        %v212 = vld [vmem:[%s179 + $0x20] sm:$0xff]
        %v213 = vld [vmem:[%s179 + $0x28] sm:$0xff]
        %v214 = vld [vmem:[%s179 + $0x30] sm:$0xff]
        %v215 = vld [vmem:[%s179 + $0x38] sm:$0xff]
        %v216 = vld [vmem:[%s179 + $0x40] sm:$0xff]
        %v217 = vld [vmem:[%s179 + $0x48] sm:$0xff]
        %v218 = vld [vmem:[%s179 + $0x50] sm:$0xff]
        %v219 = vld [vmem:[%s179 + $0x58] sm:$0xff]
        %v220 = vld [vmem:[%s179 + $0x60] sm:$0xff]
        %v221 = vld [vmem:[%s179 + $0x68] sm:$0xff]
        %v222 = vld [vmem:[%s179 + $0x70] sm:$0xff]
        %v223 = vld [vmem:[%s179 + $0x78] sm:$0xff]
        %224 = vst [vmem:[#allocation2] sm:$0xff] %v208
        %225 = vst [vmem:[#allocation2 + $0x8] sm:$0xff] %v209
        %226 = vst [vmem:[#allocation2 + $0x10] sm:$0xff] %v210
        %227 = vst [vmem:[#allocation2 + $0x18] sm:$0xff] %v211
        %228 = vst [vmem:[#allocation2 + $0x20] sm:$0xff] %v212
        %229 = vst [vmem:[#allocation2 + $0x28] sm:$0xff] %v213
        %230 = vst [vmem:[#allocation2 + $0x30] sm:$0xff] %v214
        %231 = vst [vmem:[#allocation2 + $0x38] sm:$0xff] %v215
        %232 = vst [vmem:[#allocation2 + $0x40] sm:$0xff] %v216
        %233 = vst [vmem:[#allocation2 + $0x48] sm:$0xff] %v217
        %234 = vst [vmem:[#allocation2 + $0x50] sm:$0xff] %v218
        %235 = vst [vmem:[#allocation2 + $0x58] sm:$0xff] %v219
        %236 = vst [vmem:[#allocation2 + $0x60] sm:$0xff] %v220
        %237 = vst [vmem:[#allocation2 + $0x68] sm:$0xff] %v221
        %238 = vst [vmem:[#allocation2 + $0x70] sm:$0xff] %v222
        %239 = vst [vmem:[#allocation2 + $0x78] sm:$0xff] %v223
        %240 = vst [vmem:[#allocation3] sm:$0xff] %v208
        %241 = vst [vmem:[#allocation3 + $0x8] sm:$0xff] %v209
        %242 = vst [vmem:[#allocation3 + $0x10] sm:$0xff] %v210
        %243 = vst [vmem:[#allocation3 + $0x18] sm:$0xff] %v211
        %244 = vst [vmem:[#allocation3 + $0x20] sm:$0xff] %v212
        %245 = vst [vmem:[#allocation3 + $0x28] sm:$0xff] %v213
        %246 = vst [vmem:[#allocation3 + $0x30] sm:$0xff] %v214
        %247 = vst [vmem:[#allocation3 + $0x38] sm:$0xff] %v215
        %248 = vst [vmem:[#allocation3 + $0x40] sm:$0xff] %v216
        %249 = vst [vmem:[#allocation3 + $0x48] sm:$0xff] %v217
        %250 = vst [vmem:[#allocation3 + $0x50] sm:$0xff] %v218
        %251 = vst [vmem:[#allocation3 + $0x58] sm:$0xff] %v219
        %252 = vst [vmem:[#allocation3 + $0x60] sm:$0xff] %v220
        %253 = vst [vmem:[#allocation3 + $0x68] sm:$0xff] %v221
        %254 = vst [vmem:[#allocation3 + $0x70] sm:$0xff] %v222
        %255 = vst [vmem:[#allocation3 + $0x78] sm:$0xff] %v223
        %p256 = scmp.eq.s32.totalorder %s22, 0
        // Predicated region
        $region37: #{tpu_custom_call.1} parent=31 // pred_check
          %p257 = pneg %p256
        $region38: #{tpu_custom_call.1} parent=31 // pred_check_branch
          %259 = sbr.rel (%p257) target = $region40
        $region39: #{tpu_custom_call.1} parent=31 // pred_region
          %v260 = vld [vmem:[#allocation2] sm:$0xff]
          %v261 = vld [vmem:[#allocation2 + $0x8] sm:$0xff]
          %v262 = vld [vmem:[#allocation2 + $0x10] sm:$0xff]
          %v263 = vld [vmem:[#allocation2 + $0x18] sm:$0xff]
          %v264 = vld [vmem:[#allocation2 + $0x20] sm:$0xff]
          %v265 = vld [vmem:[#allocation2 + $0x28] sm:$0xff]
          %v266 = vld [vmem:[#allocation2 + $0x30] sm:$0xff]
          %v267 = vld [vmem:[#allocation2 + $0x38] sm:$0xff]
          %v268 = vld [vmem:[#allocation2 + $0x40] sm:$0xff]
          %v269 = vld [vmem:[#allocation2 + $0x48] sm:$0xff]
          %v270 = vld [vmem:[#allocation2 + $0x50] sm:$0xff]
          %v271 = vld [vmem:[#allocation2 + $0x58] sm:$0xff]
          %v272 = vld [vmem:[#allocation2 + $0x60] sm:$0xff]
          %v273 = vld [vmem:[#allocation2 + $0x68] sm:$0xff]
          %v274 = vld [vmem:[#allocation2 + $0x70] sm:$0xff]
          %v275 = vld [vmem:[#allocation2 + $0x78] sm:$0xff]
          %v276 = vadd.f32 %v260, %v261
          %277 = vadd.xlane.f32.xlu0 %v276
          %v278 = vpop.xlane.xlu0 %277
          %v279 = vadd.f32 %v262, %v263
          %280 = vadd.xlane.f32.xlu0 %v279
          %v281 = vpop.xlane.xlu0 %280
          %v282 = vadd.f32 %v264, %v265
          %283 = vadd.xlane.f32.xlu0 %v282
          %v284 = vpop.xlane.xlu0 %283
          %v285 = vadd.f32 %v266, %v267
          %286 = vadd.xlane.f32.xlu0 %v285
          %v287 = vpop.xlane.xlu0 %286
          %v288 = vadd.f32 %v268, %v269
          %289 = vadd.xlane.f32.xlu0 %v288
          %v290 = vpop.xlane.xlu0 %289
          %v291 = vadd.f32 %v270, %v271
          %292 = vadd.xlane.f32.xlu0 %v291
          %v293 = vpop.xlane.xlu0 %292
          %v294 = vadd.f32 %v272, %v273
          %295 = vadd.xlane.f32.xlu0 %v294
          %v296 = vpop.xlane.xlu0 %295
          %v297 = vadd.f32 %v274, %v275
          %298 = vadd.xlane.f32.xlu0 %v297
          %v299 = vpop.xlane.xlu0 %298
          %v300 = vmul.f32 %v278, 0.00390625
          %v301 = vmul.f32 %v281, 0.00390625
          %v302 = vmul.f32 %v284, 0.00390625
          %v303 = vmul.f32 %v287, 0.00390625
          %v304 = vmul.f32 %v290, 0.00390625
          %v305 = vmul.f32 %v293, 0.00390625
          %v306 = vmul.f32 %v296, 0.00390625
          %v307 = vmul.f32 %v299, 0.00390625
          %v308 = vld [vmem:[#allocation3] sm:$0xff]
          %v309 = vld [vmem:[#allocation3 + $0x8] sm:$0xff]
          %v310 = vld [vmem:[#allocation3 + $0x10] sm:$0xff]
          %v311 = vld [vmem:[#allocation3 + $0x18] sm:$0xff]
          %v312 = vld [vmem:[#allocation3 + $0x20] sm:$0xff]
          %v313 = vld [vmem:[#allocation3 + $0x28] sm:$0xff]
          %v314 = vld [vmem:[#allocation3 + $0x30] sm:$0xff]
          %v315 = vld [vmem:[#allocation3 + $0x38] sm:$0xff]
          %v316 = vld [vmem:[#allocation3 + $0x40] sm:$0xff]
          %v317 = vld [vmem:[#allocation3 + $0x48] sm:$0xff]
          %v318 = vld [vmem:[#allocation3 + $0x50] sm:$0xff]
          %v319 = vld [vmem:[#allocation3 + $0x58] sm:$0xff]
          %v320 = vld [vmem:[#allocation3 + $0x60] sm:$0xff]
          %v321 = vld [vmem:[#allocation3 + $0x68] sm:$0xff]
          %v322 = vld [vmem:[#allocation3 + $0x70] sm:$0xff]
          %v323 = vld [vmem:[#allocation3 + $0x78] sm:$0xff]
          %v324 = vmax.f32 %v308, %v309
          %325 = vmax.xlane.f32.xlu0 %v324
          %v326 = vpop.xlane.xlu0 %325
          %v327 = vmax.f32 %v310, %v311
          %328 = vmax.xlane.f32.xlu0 %v327
          %v329 = vpop.xlane.xlu0 %328
          %v330 = vmax.f32 %v312, %v313
          %331 = vmax.xlane.f32.xlu0 %v330
          %v332 = vpop.xlane.xlu0 %331
          %v333 = vmax.f32 %v314, %v315
          %334 = vmax.xlane.f32.xlu0 %v333
          %v335 = vpop.xlane.xlu0 %334
          %v336 = vmax.f32 %v316, %v317
          %337 = vmax.xlane.f32.xlu0 %v336
          %v338 = vpop.xlane.xlu0 %337
          %v339 = vmax.f32 %v318, %v319
          %340 = vmax.xlane.f32.xlu0 %v339
          %v341 = vpop.xlane.xlu0 %340
          %v342 = vmax.f32 %v320, %v321
          %343 = vmax.xlane.f32.xlu0 %v342
          %v344 = vpop.xlane.xlu0 %343
          %v345 = vmax.f32 %v322, %v323
          %346 = vmax.xlane.f32.xlu0 %v345
          %v347 = vpop.xlane.xlu0 %346
          %vm348 = vcmask 7168
          %v349 = vsel %vm348, %v300, %v326
          %v350 = vsel %vm348, %v301, %v329
          %v351 = vsel %vm348, %v302, %v332
          %v352 = vsel %vm348, %v303, %v335
          %v353 = vsel %vm348, %v304, %v338
          %v354 = vsel %vm348, %v305, %v341
          %v355 = vsel %vm348, %v306, %v344
          %v356 = vsel %vm348, %v307, %v347
          %v357 = vld [vmem:[%s1] sm:$0xf]
          %vm358 = vcmask 523264
          %v360 = vsel %vm358, %v357, 0
          %362 = vmatprep.subr.mxu0 0.0
          %363 = vmatpush1.msra.mxu0 %v349
          %364 = vmatprep.subr.mxu0 0.0
          %365 = vmatpush1.msra.mxu0 %v350
          %366 = vmatprep.subr.mxu0 0.0
          %367 = vmatpush1.msra.mxu0 %v351
          %368 = vmatprep.subr.mxu0 0.0
          %369 = vmatpush1.msra.mxu0 %v352
          %370 = vmatprep.subr.mxu0 0.0
          %371 = vmatpush1.msra.mxu0 %v353
          %372 = vmatprep.subr.mxu0 0.0
          %373 = vmatpush1.msra.mxu0 %v354
          %374 = vmatprep.subr.mxu0 0.0
          %375 = vmatpush1.msra.mxu0 %v355
          %376 = vmatprep.subr.mxu0 0.0
          %377 = vmatpush1.msra.mxu0 %v356
          %378 = vmatprep.subr.mxu0 0.0
          %379 = vmatpush1.msra.mxu0 0.0
          %380 = vmatprep.subr.mxu0 0.0
          %381 = vmatpush1.msra.mxu0 0.0
          %382 = vmatprep.subr.mxu0 0.0
          %383 = vmatpush1.msra.mxu0 0.0
          %384 = vmatprep.subr.mxu0 0.0
          %385 = vmatpush1.msra.mxu0 0.0
          %386 = vmatprep.subr.mxu0 0.0
          %387 = vmatpush1.msra.mxu0 0.0
          %388 = vmatprep.subr.mxu0 0.0
          %389 = vmatpush1.msra.mxu0 0.0
          %390 = vmatprep.subr.mxu0 0.0
          %391 = vmatpush1.msra.mxu0 0.0
          %392 = vmatprep.subr.mxu0 0.0
          %393 = vmatpush1.msra.mxu0 0.0
          %394 = vmatprep.subr.mxu0 0.0
          %395 = vmatpush1.msra.mxu0 0.0
          %396 = vmatprep.subr.mxu0 0.0
          %397 = vmatpush1.msra.mxu0 0.0
          %398 = vmatprep.subr.mxu0 0.0
          %399 = vmatpush1.msra.mxu0 0.0
          %400 = vmatprep.subr.mxu0 0.0
          %401 = vmatpush1.msra.mxu0 0.0
          %402 = vmatprep.subr.mxu0 0.0
          %403 = vmatpush1.msra.mxu0 0.0
          %404 = vmatprep.subr.mxu0 0.0
          %405 = vmatpush1.msra.mxu0 0.0
          %406 = vmatprep.subr.mxu0 0.0
          %407 = vmatpush1.msra.mxu0 0.0
          %408 = vmatprep.subr.mxu0 0.0
          %409 = vmatpush1.msra.mxu0 0.0
          %410 = vmatprep.subr.mxu0 0.0
          %411 = vmatpush1.msra.mxu0 0.0
          %412 = vmatprep.subr.mxu0 0.0
          %413 = vmatpush1.msra.mxu0 0.0
          %414 = vmatprep.subr.mxu0 0.0
          %415 = vmatpush1.msra.mxu0 0.0
          %416 = vmatprep.subr.mxu0 0.0
          %417 = vmatpush1.msra.mxu0 0.0
          %418 = vmatprep.subr.mxu0 0.0
          %419 = vmatpush1.msra.mxu0 0.0
          %420 = vmatprep.subr.mxu0 0.0
          %421 = vmatpush1.msra.mxu0 0.0
          %422 = vmatprep.subr.mxu0 0.0
          %423 = vmatpush1.msra.mxu0 0.0
          %424 = vmatprep.subr.mxu0 0.0
          %425 = vmatpush1.msra.mxu0 0.0
          %426 = vmatprep.mubr.f32.mxu0 0.0
          %427 = vmatmul.mubr.f32.gmra.mrb[0].mxu0 %v360
          %v428 = vpop.f32.mrb[0].mxu0
          %v429 = vadd.f32 0.0, %v428
          %v430 = vpop.f32.mrb[0].mxu0
          %431 = vdwg.mxu0
          %v432 = vmax.f32 %v429, 0.0
          %v433 = vld [vmem:[%s2] sm:$0xff]
          %v434 = vld [vmem:[%s2 + $0x8] sm:$0xff]
          %v435 = vld [vmem:[%s2 + $0x10] sm:$0xff]
          %v436 = vld [vmem:[%s2 + $0x18] sm:$0xff]
          %v437 = vld [vmem:[%s2 + $0x20] sm:$0xff]
          %v438 = vld [vmem:[%s2 + $0x28] sm:$0xff]
          %v439 = vld [vmem:[%s2 + $0x30] sm:$0xff]
          %v440 = vld [vmem:[%s2 + $0x38] sm:$0xff]
          %vm441 = vcmask 31744
          %v443 = vsel %vm441, %v433, 0
          %v446 = vsel %vm441, %v434, 0
          %v449 = vsel %vm441, %v435, 0
          %v452 = vsel %vm441, %v436, 0
          %v455 = vsel %vm441, %v437, 0
          %v458 = vsel %vm441, %v438, 0
          %v461 = vsel %vm441, %v439, 0
          %v464 = vsel %vm441, %v440, 0
          %vm466 = vcmask 1043456
          %v468 = vsel %vm466, %v432, 0
          %470 = vmatprep.subr.mxu0 0.0
          %471 = vmatpush1.msra.mxu0 %v468
          %472 = vmatprep.subr.mxu0 0.0
          %473 = vmatpush1.msra.mxu0 0.0
          %474 = vmatprep.subr.mxu0 0.0
          %475 = vmatpush1.msra.mxu0 0.0
          %476 = vmatprep.subr.mxu0 0.0
          %477 = vmatpush1.msra.mxu0 0.0
          %478 = vmatprep.subr.mxu0 0.0
          %479 = vmatpush1.msra.mxu0 0.0
          %480 = vmatprep.subr.mxu0 0.0
          %481 = vmatpush1.msra.mxu0 0.0
          %482 = vmatprep.subr.mxu0 0.0
          %483 = vmatpush1.msra.mxu0 0.0
          %484 = vmatprep.subr.mxu0 0.0
          %485 = vmatpush1.msra.mxu0 0.0
          %486 = vmatprep.subr.mxu0 0.0
          %487 = vmatpush1.msra.mxu0 0.0
          %488 = vmatprep.subr.mxu0 0.0
          %489 = vmatpush1.msra.mxu0 0.0
          %490 = vmatprep.subr.mxu0 0.0
          %491 = vmatpush1.msra.mxu0 0.0
          %492 = vmatprep.subr.mxu0 0.0
          %493 = vmatpush1.msra.mxu0 0.0
          %494 = vmatprep.subr.mxu0 0.0
          %495 = vmatpush1.msra.mxu0 0.0
          %496 = vmatprep.subr.mxu0 0.0
          %497 = vmatpush1.msra.mxu0 0.0
          %498 = vmatprep.subr.mxu0 0.0
          %499 = vmatpush1.msra.mxu0 0.0
          %500 = vmatprep.subr.mxu0 0.0
          %501 = vmatpush1.msra.mxu0 0.0
          %502 = vmatprep.subr.mxu0 0.0
          %503 = vmatpush1.msra.mxu0 0.0
          %504 = vmatprep.subr.mxu0 0.0
          %505 = vmatpush1.msra.mxu0 0.0
          %506 = vmatprep.subr.mxu0 0.0
          %507 = vmatpush1.msra.mxu0 0.0
          %508 = vmatprep.subr.mxu0 0.0
          %509 = vmatpush1.msra.mxu0 0.0
          %510 = vmatprep.subr.mxu0 0.0
          %511 = vmatpush1.msra.mxu0 0.0
          %512 = vmatprep.subr.mxu0 0.0
          %513 = vmatpush1.msra.mxu0 0.0
          %514 = vmatprep.subr.mxu0 0.0
          %515 = vmatpush1.msra.mxu0 0.0
          %516 = vmatprep.subr.mxu0 0.0
          %517 = vmatpush1.msra.mxu0 0.0
          %518 = vmatprep.subr.mxu0 0.0
          %519 = vmatpush1.msra.mxu0 0.0
          %520 = vmatprep.subr.mxu0 0.0
          %521 = vmatpush1.msra.mxu0 0.0
          %522 = vmatprep.subr.mxu0 0.0
          %523 = vmatpush1.msra.mxu0 0.0
          %524 = vmatprep.subr.mxu0 0.0
          %525 = vmatpush1.msra.mxu0 0.0
          %526 = vmatprep.subr.mxu0 0.0
          %527 = vmatpush1.msra.mxu0 0.0
          %528 = vmatprep.subr.mxu0 0.0
          %529 = vmatpush1.msra.mxu0 0.0
          %530 = vmatprep.subr.mxu0 0.0
          %531 = vmatpush1.msra.mxu0 0.0
          %532 = vmatprep.subr.mxu0 0.0
          %533 = vmatpush1.msra.mxu0 0.0
          %534 = vmatprep.mubr.f32.mxu0 0.0
          %535 = vmatmul.mubr.f32.gmra.mrb[0].mxu0 %v443
          %v536 = vpop.f32.mrb[0].mxu0
          %v537 = vadd.f32 0.0, %v536
          %v538 = vpop.f32.mrb[0].mxu0
          %539 = vmatprep.mubr.f32.mxu0 0.0
          %540 = vmatmul.mubr.f32.gmra.mrb[0].mxu0 %v446
          %v541 = vpop.f32.mrb[0].mxu0
          %v542 = vadd.f32 0.0, %v541
          %v543 = vpop.f32.mrb[0].mxu0
          %544 = vmatprep.mubr.f32.mxu0 0.0
          %545 = vmatmul.mubr.f32.gmra.mrb[0].mxu0 %v449
          %v546 = vpop.f32.mrb[0].mxu0
          %v547 = vadd.f32 0.0, %v546
          %v548 = vpop.f32.mrb[0].mxu0
          %549 = vmatprep.mubr.f32.mxu0 0.0
          %550 = vmatmul.mubr.f32.gmra.mrb[0].mxu0 %v452
          %v551 = vpop.f32.mrb[0].mxu0
          %v552 = vadd.f32 0.0, %v551
          %v553 = vpop.f32.mrb[0].mxu0
          %554 = vmatprep.mubr.f32.mxu0 0.0
          %555 = vmatmul.mubr.f32.gmra.mrb[0].mxu0 %v455
          %v556 = vpop.f32.mrb[0].mxu0
          %v557 = vadd.f32 0.0, %v556
          %v558 = vpop.f32.mrb[0].mxu0
          %559 = vmatprep.mubr.f32.mxu0 0.0
          %560 = vmatmul.mubr.f32.gmra.mrb[0].mxu0 %v458
          %v561 = vpop.f32.mrb[0].mxu0
          %v562 = vadd.f32 0.0, %v561
          %v563 = vpop.f32.mrb[0].mxu0
          %564 = vmatprep.mubr.f32.mxu0 0.0
          %565 = vmatmul.mubr.f32.gmra.mrb[0].mxu0 %v461
          %v566 = vpop.f32.mrb[0].mxu0
          %v567 = vadd.f32 0.0, %v566
          %v568 = vpop.f32.mrb[0].mxu0
          %569 = vmatprep.mubr.f32.mxu0 0.0
          %570 = vmatmul.mubr.f32.gmra.mrb[0].mxu0 %v464
          %v571 = vpop.f32.mrb[0].mxu0
          %v572 = vadd.f32 0.0, %v571
          %v573 = vpop.f32.mrb[0].mxu0
          %574 = vdwg.mxu0
          %583 = vrot.lane.b32.xlu0 %v537, 127
          %v584 = vpop.permute.xlu0 %583
          %585 = vrot.lane.b32.xlu0 %v542, 127
          %v586 = vpop.permute.xlu0 %585
          %587 = vrot.lane.b32.xlu0 %v547, 127
          %v588 = vpop.permute.xlu0 %587
          %589 = vrot.lane.b32.xlu0 %v552, 127
          %v590 = vpop.permute.xlu0 %589
          %591 = vrot.lane.b32.xlu0 %v557, 127
          %v592 = vpop.permute.xlu0 %591
          %593 = vrot.lane.b32.xlu0 %v562, 127
          %v594 = vpop.permute.xlu0 %593
          %595 = vrot.lane.b32.xlu0 %v567, 127
          %v596 = vpop.permute.xlu0 %595
          %597 = vrot.lane.b32.xlu0 %v572, 127
          %v598 = vpop.permute.xlu0 %597
          %v607 = vadd.f32 %v537, %v584
          %v608 = vadd.f32 %v542, %v586
          %v609 = vadd.f32 %v547, %v588
          %v610 = vadd.f32 %v552, %v590
          %v611 = vadd.f32 %v557, %v592
          %v612 = vadd.f32 %v562, %v594
          %v613 = vadd.f32 %v567, %v596
          %v614 = vadd.f32 %v572, %v598
          %v615 = vxor.u32 %v607, 2147483648
          %v616 = vxor.u32 %v608, 2147483648
          %v617 = vxor.u32 %v609, 2147483648
          %v618 = vxor.u32 %v610, 2147483648
          %v619 = vxor.u32 %v611, 2147483648
          %v620 = vxor.u32 %v612, 2147483648
          %v621 = vxor.u32 %v613, 2147483648
          %v622 = vxor.u32 %v614, 2147483648
          %v623 = vmul.f32 %v615, 1.442695
          %v624 = vpow.pop %v623
          %v625 = vmul.f32 %v616, 1.442695
          %v626 = vpow.pop %v625
          %v627 = vmul.f32 %v617, 1.442695
          %v628 = vpow.pop %v627
          %v629 = vmul.f32 %v618, 1.442695
          %v630 = vpow.pop %v629
          %v631 = vmul.f32 %v619, 1.442695
          %v632 = vpow.pop %v631
          %v633 = vmul.f32 %v620, 1.442695
          %v634 = vpow.pop %v633
          %v635 = vmul.f32 %v621, 1.442695
          %v636 = vpow.pop %v635
          %v637 = vmul.f32 %v622, 1.442695
          %v638 = vpow.pop %v637
          %v639 = vadd.f32 %v624, 1.0
          %v640 = vadd.f32 %v626, 1.0
          %v641 = vadd.f32 %v628, 1.0
          %v642 = vadd.f32 %v630, 1.0
          %v643 = vadd.f32 %v632, 1.0
          %v644 = vadd.f32 %v634, 1.0
          %v645 = vadd.f32 %v636, 1.0
          %v646 = vadd.f32 %v638, 1.0
          %v647 = vrcp.pop %v639
          %v648 = vmul.f32 1.0, %v647
          %v649 = vrcp.pop %v640
          %v650 = vmul.f32 1.0, %v649
          %v651 = vrcp.pop %v641
          %v652 = vmul.f32 1.0, %v651
          %v653 = vrcp.pop %v642
          %v654 = vmul.f32 1.0, %v653
          %v655 = vrcp.pop %v643
          %v656 = vmul.f32 1.0, %v655
          %v657 = vrcp.pop %v644
          %v658 = vmul.f32 1.0, %v657
          %v659 = vrcp.pop %v645
          %v660 = vmul.f32 1.0, %v659
          %v661 = vrcp.pop %v646
          %v662 = vmul.f32 1.0, %v661
          %663 = vst.msk [vmem:[%s207] sm:$0xff] %vm348, %v648
          %664 = vst.msk [vmem:[%s207 + $0x8] sm:$0xff] %vm348, %v650
          %665 = vst.msk [vmem:[%s207 + $0x10] sm:$0xff] %vm348, %v652
          %666 = vst.msk [vmem:[%s207 + $0x18] sm:$0xff] %vm348, %v654
          %667 = vst.msk [vmem:[%s207 + $0x20] sm:$0xff] %vm348, %v656
          %668 = vst.msk [vmem:[%s207 + $0x28] sm:$0xff] %vm348, %v658
          %669 = vst.msk [vmem:[%s207 + $0x30] sm:$0xff] %vm348, %v660
          %670 = vst.msk [vmem:[%s207 + $0x38] sm:$0xff] %vm348, %v662
        $region40: #{tpu_custom_call.1} parent=31 // pred_fallthru
          _
        %p671 = scmp.lt.s32.totalorder %s21, 1
        %s672 = scalar_select %p671, %s21, 1
        %s673 = smul.addr %s672, 8
        %s674 = smul.addr %s673, 8
        %s675 = scalar_lea.vmem %s3, %s674
        // Predicated region
        $region41: #{tpu_custom_call.1} parent=31 // pred_check
          %p676 = pneg %p117
        $region42: #{tpu_custom_call.1} parent=31 // pred_check_branch
          %678 = sbr.rel (%p676) target = $region44
        $region43: #{tpu_custom_call.1} parent=31 // pred_region
          _
        $region44: #{tpu_custom_call.1} parent=31 // pred_fallthru
          _
      $region32: #{tpu_custom_call.1} parent=5 // pred_fallthru
        _
      %p679 = scmp.le.s32.totalorder 2, %s12
      // Predicated region
      $region45: #{tpu_custom_call.1} parent=5 // pred_check
        %p680 = pneg %p679
      $region46: #{tpu_custom_call.1} parent=5 // pred_check_branch
        %682 = sbr.rel (%p680) target = $region48
      $region47: #{tpu_custom_call.1} parent=5 // pred_region
        %s683 = ssub.s32 %s12, 2
        // Predicated region
        $region49: #{tpu_custom_call.1} parent=47 // pred_check
          %p684 = pneg %p123
        $region50: #{tpu_custom_call.1} parent=47 // pred_check_branch
          %686 = sbr.rel (%p684) target = $region52
        $region51: #{tpu_custom_call.1} parent=47 // pred_region
          %p687 = scmp.lt.s32.totalorder %s23, 1
          %s688 = scalar_select %p687, %s23, 1
          %s689 = smul.addr %s688, 8
          %s690 = smul.addr %s689, 8
          %s691 = scalar_lea.vmem %s3, %s690
        $region52: #{tpu_custom_call.1} parent=47 // pred_fallthru
          _
      $region48: #{tpu_custom_call.1} parent=5 // pred_fallthru
        _
    $region6: #{tpu_custom_call.1} parent=1 // loop_footer
      %s16 = sadd.s32 1, %s12
    $region7: #{tpu_custom_call.1} parent=1 // loop_footer_branch
      %11 = sbr.rel target = $region3
    $region8: #{tpu_custom_call.1} parent=1 // loop_exit
      _
    %692 = vsyncpa [#allocation5], 1
    %s693 = scalar_lea.sflag [#allocation5], 1
    %694 = vsyncpa %s693, 1

</llo_original>
